<compile_context>
chip_gen: v7x
topology: tpu7x:2x2x1
jax: 0.10.0
libtpu: 0.0.40
codegen_flags: <defaults>
</compile_context>

<pallas_src>
import functools

import jax
import jax.numpy as jnp
from jax.experimental import pallas as pl
from jax.experimental.pallas import tpu as pltpu


def _round_up(x, m):
    return (x + m - 1) // m * m


def _cdiv(a, b):
    return -(-a // b)


def prediction_head_kernel(node_ref, edge_ref, q_ref,
                           wl_ref, bl_ref, wm_ref, bm_ref,
                           wm2_ref, bm2_ref, wa_ref, ba_ref,
                           out_ref, nacc_ref, eacc_ref,
                           *, k_n, k_e):
    k = pl.program_id(1)
    f32, bf16 = jnp.float32, jnp.bfloat16
    num_k = max(k_n, k_e)

    @pl.when(k == 0)
    def _():
        nacc_ref[...] = jnp.zeros_like(nacc_ref)
        eacc_ref[...] = jnp.zeros_like(eacc_ref)

    # Per-graph node/edge sums: VPU/XLU reduction over the streamed row tile,
    # accumulated in f32 scratch across the reduce grid axis.  The shorter
    # stream stops accumulating (and its index map stops advancing) once it is
    # exhausted, instead of streaming zero padding.
    def _accum(acc_ref, x_ref, extent):
        def do():
            acc_ref[...] += jnp.sum(x_ref[...].astype(f32), axis=1)
        if extent == num_k:          # static: no guard needed
            do()
        else:
            pl.when(k < extent)(do)

    _accum(nacc_ref, node_ref, k_n)
    _accum(eacc_ref, edge_ref, k_e)

    @pl.when(k == num_k - 1)
    def _():
        # lang = lang_fc(question_emb)
        lang = (jnp.dot(q_ref[...].astype(bf16), wl_ref[...],
                        preferred_element_type=f32) + bl_ref[...])        # (TB, H)
        # mid_fc on concat([nodes, edges, lang]) as ONE (TB,3H)@(3H,H) MXU pass.
        g = jnp.concatenate([nacc_ref[...].astype(bf16),
                             eacc_ref[...].astype(bf16),
                             lang.astype(bf16)], axis=-1)                 # (TB, 3H)
        mid = jnp.maximum(jnp.dot(g, wm_ref[...], preferred_element_type=f32)
                          + bm_ref[...], 0.0)                             # relu
        mid2 = jnp.maximum(jnp.dot(mid.astype(bf16), wm2_ref[...],
                                   preferred_element_type=f32) + bm2_ref[...],
                           0.0)                                           # relu
        pred = (jnp.dot(mid2.astype(bf16), wa_ref[...],
                        preferred_element_type=f32) + ba_ref[...])        # (TB, A_pad)
        out_ref[...] = pred.astype(out_ref.dtype)


def prediction_head(node_feats, edge_feats, question_emb, params,
                    *, tile_b=128, max_row_tile=None):
    B, N, H = node_feats.shape
    E = edge_feats.shape[1]
    A = params["wa"].shape[1]
    bf16, f32 = jnp.bfloat16, jnp.float32
    A_pad = _round_up(A, 128)                       # lane-dense output stores

    # ---- batch tiling (prefer >=2 tiles so megacore / v7x's 2nd TC has work) --
    if B < 8:
        TB = B                                      # block == full dim: no batch pad
    else:
        TB = min(_round_up(B, 8), tile_b)
        if TB >= 16 and _round_up(B, TB) == TB:     # only one batch tile -> split
            TB = _round_up(TB // 2, 8)
    B_pad = _round_up(B, TB)

    # ---- generation-aware VMEM budget -> row-tile sizes -----------------------
    try:
        vmem_cap = int(pltpu.get_tpu_info().vmem_capacity_bytes)
    except Exception:
        vmem_cap = 64 << 20                         # conservative (v7x per-TC VMEM)
    budget = vmem_cap - max(8 << 20, vmem_cap // 8)  # compiler/internal headroom

    feat_bytes = jnp.dtype(node_feats.dtype).itemsize
    q_bytes = jnp.dtype(question_emb.dtype).itemsize

    def _vmem_plan(tb):
        fixed = (5 * H * H + H * A_pad) * 2         # bf16 weights, single-buffered
        fixed += (3 * H + A_pad) * 4                # f32 biases, single-buffered
        fixed += 2 * tb * H * q_bytes               # question (double-buffered)
        fixed += 2 * tb * A_pad * 4                 # output   (double-buffered)
        fixed += 2 * tb * H * 4                     # f32 accumulators (scratch)
        fixed += 2 << 20                            # mosaic internal scratch slack
        per_row = 2 * 2 * tb * H * feat_bytes       # node+edge, double-buffered
        return fixed, per_row

    fixed, per_row = _vmem_plan(TB)
    while TB > 8 and fixed + 8 * per_row > budget:  # H-aware: shrink TB if needed
        TB = max(8, _round_up(TB // 2, 8))
        B_pad = _round_up(B, TB)
        fixed, per_row = _vmem_plan(TB)
    t_fit = (budget - fixed) // max(per_row, 1)
    t_max = max(8, min(2048, t_fit) // 8 * 8)
    if max_row_tile is not None:
        t_max = max(8, min(t_max, (max_row_tile // 8) * 8))

    # Independent reduce extents for nodes vs. edges (no shared K*T padding).
    def _pick_tile(n, tmax):
        n8 = _round_up(max(n, 1), 8)
        steps = _cdiv(n8, tmax)
        t = _round_up(_cdiv(n8, steps), 8)
        return t, _cdiv(n8, t)

    T_n, K_n = _pick_tile(N, t_max)
    T_e, K_e = _pick_tile(E, t_max)
    K = max(K_n, K_e)

    def _pad(x, shape):
        if tuple(x.shape) == tuple(shape):
            return x
        return jnp.pad(x, [(0, s - d) for d, s in zip(x.shape, shape)])

    # Features stream in their native dtype: no extra pad+recast HBM pass.
    node_p = _pad(node_feats, (B_pad, K_n * T_n, H))
    edge_p = _pad(edge_feats, (B_pad, K_e * T_e, H))
    q_p = _pad(question_emb, (B_pad, H))

    wl = params["wl"].astype(bf16)
    wm = params["wm"].astype(bf16)                  # (3H, H), unsplit
    wm2 = params["wm2"].astype(bf16)
    wa = _pad(params["wa"], (H, A_pad)).astype(bf16)
    bl = params["bl"].astype(f32)
    bm = params["bm"].astype(f32)
    bm2 = params["bm2"].astype(f32)
    ba = _pad(params["ba"], (1, A_pad)).astype(f32)

    def const(shape):
        nd = len(shape)
        return pl.BlockSpec(shape, lambda b, k, _nd=nd: (0,) * _nd,
                            pipeline_mode=pl.Buffered(1))   # resident, 1 buffer

    in_specs = [
        pl.BlockSpec((TB, T_n, H), lambda b, k: (b, jnp.minimum(k, K_n - 1), 0)),
        pl.BlockSpec((TB, T_e, H), lambda b, k: (b, jnp.minimum(k, K_e - 1), 0)),
        pl.BlockSpec((TB, H), lambda b, k: (b, 0)),
        const((H, H)), const((1, H)),               # lang_fc
        const((3 * H, H)), const((1, H)),           # mid_fc (fused concat weight)
        const((H, H)), const((1, H)),               # mid_fc2
        const((H, A_pad)), const((1, A_pad)),       # answer_fc
    ]
    out_spec = pl.BlockSpec((TB, A_pad), lambda b, k: (b, 0))

    flops = B_pad * (K_n * T_n + K_e * T_e) * H                 # reductions
    flops += 2 * B_pad * (5 * H * H + H * A_pad)                # lang+mid+mid2+ans
    bytes_accessed = ((node_p.size + edge_p.size) * feat_bytes
                      + q_p.size * q_bytes
                      + (5 * H * H + H * A_pad) * 2 + (3 * H + A_pad) * 4
                      + B_pad * A_pad * 4)

    kernel = functools.partial(prediction_head_kernel, k_n=K_n, k_e=K_e)
    out = pl.pallas_call(
        kernel,
        out_shape=jax.ShapeDtypeStruct((B_pad, A_pad), f32),
        grid=(B_pad // TB, K),
        in_specs=in_specs,
        out_specs=out_spec,
        scratch_shapes=[pltpu.VMEM((TB, H), f32),   # node-sum accumulator
                        pltpu.VMEM((TB, H), f32)],  # edge-sum accumulator
        compiler_params=pltpu.CompilerParams(
            dimension_semantics=("parallel", "arbitrary"),
            vmem_limit_bytes=int(budget)),
        cost_estimate=pl.CostEstimate(flops=int(flops), transcendentals=0,
                                      bytes_accessed=int(bytes_accessed)),
    )(node_p, edge_p, q_p, wl, bl, wm, bm, wm2, bm2, wa, ba)
    return out[:B, :A]


def make_params(key, hidden_size, num_answers):
    ks = jax.random.split(key, 8)
    H, A = hidden_size, num_answers
    # Weights stored pre-transposed: (in_features, out_features), so y = x @ W + b.
    return {
        "wl": jax.random.normal(ks[0], (H, H), jnp.float32) * 0.02,
        "bl": jax.random.normal(ks[1], (1, H), jnp.float32) * 0.02,
        "wm": jax.random.normal(ks[2], (3 * H, H), jnp.float32) * 0.02,
        "bm": jax.random.normal(ks[3], (1, H), jnp.float32) * 0.02,
        "wm2": jax.random.normal(ks[4], (H, H), jnp.float32) * 0.02,
        "bm2": jax.random.normal(ks[5], (1, H), jnp.float32) * 0.02,
        "wa": jax.random.normal(ks[6], (H, A), jnp.float32) * 0.02,
        "ba": jax.random.normal(ks[7], (1, A), jnp.float32) * 0.02,
    }


def reference(node_feats, edge_feats, question_emb, params):
    # Pure-JAX reference mirroring the kernel's f32-sum / bf16-matmul math.
    bf16, f32 = jnp.bfloat16, jnp.float32
    nodes_sum = jnp.sum(node_feats.astype(f32), axis=1)
    edges_sum = jnp.sum(edge_feats.astype(f32), axis=1)
    lang = (jnp.dot(question_emb.astype(bf16), params["wl"].astype(bf16),
                    preferred_element_type=f32) + params["bl"])
    g = jnp.concatenate([nodes_sum.astype(bf16), edges_sum.astype(bf16),
                         lang.astype(bf16)], axis=-1)
    mid = jax.nn.relu(jnp.dot(g, params["wm"].astype(bf16),
                              preferred_element_type=f32) + params["bm"])
    mid2 = jax.nn.relu(jnp.dot(mid.astype(bf16), params["wm2"].astype(bf16),
                               preferred_element_type=f32) + params["bm2"])
    return (jnp.dot(mid2.astype(bf16), params["wa"].astype(bf16),
                    preferred_element_type=f32) + params["ba"])


if __name__ == "__main__":
    # batch graphs, nodes/graph, edges/graph, hidden, answers
    B, N, E, H, A = 4, 96, 160, 128, 32

    key = jax.random.PRNGKey(0)
    k_node, k_edge, k_q, k_p = jax.random.split(key, 4)
    node_feats = jax.random.normal(k_node, (B, N, H), jnp.float32)
    edge_feats = jax.random.normal(k_edge, (B, E, H), jnp.float32)
    question_emb = jax.random.normal(k_q, (B, H), jnp.float32)
    params = make_params(k_p, H, A)

    ref = reference(node_feats, edge_feats, question_emb, params)

    # 1) default auto-sized tiles (single reduce step at these shapes, no padding)
    pred = jax.block_until_ready(
        prediction_head(node_feats, edge_feats, question_emb, params))
    assert pred.shape == (B, A)
    assert jnp.allclose(pred, ref, atol=2e-2, rtol=2e-2), \
        float(jnp.max(jnp.abs(pred - ref)))

    # 2) forced small row tiles: exercises multiple reduce steps and independent
    #    node/edge extents (K_n != K_e) with index-map clamping + guards.
    pred2 = jax.block_until_ready(
        prediction_head(node_feats, edge_feats, question_emb, params,
                        max_row_tile=64))
    assert jnp.allclose(pred2, ref, atol=2e-2, rtol=2e-2), \
        float(jnp.max(jnp.abs(pred2 - ref)))

    print("KERNEL_OK")
</pallas_src>

<mosaic_0001>
module attributes {stable_mosaic.version = 11 : i64} {
  func.func @prediction_head_kernel(%arg0: i32, %arg1: i32, %arg2: memref<4x96x128xf32, #tpu.memory_space<vmem>>, %arg3: memref<4x160x128xf32, #tpu.memory_space<vmem>>, %arg4: memref<4x128xf32, #tpu.memory_space<vmem>>, %arg5: memref<128x128xbf16, #tpu.memory_space<vmem>>, %arg6: memref<1x128xf32, #tpu.memory_space<vmem>>, %arg7: memref<384x128xbf16, #tpu.memory_space<vmem>>, %arg8: memref<1x128xf32, #tpu.memory_space<vmem>>, %arg9: memref<128x128xbf16, #tpu.memory_space<vmem>>, %arg10: memref<1x128xf32, #tpu.memory_space<vmem>>, %arg11: memref<128x128xbf16, #tpu.memory_space<vmem>>, %arg12: memref<1x128xf32, #tpu.memory_space<vmem>>, %arg13: memref<4x128xf32, #tpu.memory_space<vmem>>, %arg14: memref<4x128xf32, #tpu.memory_space<vmem>>, %arg15: memref<4x128xf32, #tpu.memory_space<vmem>>) attributes {dimension_semantics = [#tpu.dimension_semantics<parallel>, #tpu.dimension_semantics<arbitrary>], iteration_bounds = array<i64: 1, 1>, scalar_prefetch = 0 : i64, scratch_operands = 2 : i64, tpu.core_type = #tpu.core_type<tc>, window_params = [{transform_indices = @transform_0, window_bounds = array<i64: 4, 96, 128>}, {transform_indices = @transform_1, window_bounds = array<i64: 4, 160, 128>}, {transform_indices = @transform_2, window_bounds = array<i64: 4, 128>}, {pipeline_mode = #tpu.pipeline_mode<synchronous>, transform_indices = @transform_3, window_bounds = array<i64: 128, 128>}, {pipeline_mode = #tpu.pipeline_mode<synchronous>, transform_indices = @transform_4, window_bounds = array<i64: 1, 128>}, {pipeline_mode = #tpu.pipeline_mode<synchronous>, transform_indices = @transform_5, window_bounds = array<i64: 384, 128>}, {pipeline_mode = #tpu.pipeline_mode<synchronous>, transform_indices = @transform_6, window_bounds = array<i64: 1, 128>}, {pipeline_mode = #tpu.pipeline_mode<synchronous>, transform_indices = @transform_7, window_bounds = array<i64: 128, 128>}, {pipeline_mode = #tpu.pipeline_mode<synchronous>, transform_indices = @transform_8, window_bounds = array<i64: 1, 128>}, {pipeline_mode = #tpu.pipeline_mode<synchronous>, transform_indices = @transform_9, window_bounds = array<i64: 128, 128>}, {pipeline_mode = #tpu.pipeline_mode<synchronous>, transform_indices = @transform_10, window_bounds = array<i64: 1, 128>}, {transform_indices = @transform_11, window_bounds = array<i64: 4, 128>}]} {
    %c0_i32 = arith.constant 0 : i32
    %0 = arith.cmpi eq, %arg1, %c0_i32 : i32
    %1 = arith.extui %0 : i1 to i32
    %c0_i32_0 = arith.constant 0 : i32
    %2 = arith.cmpi ne, %1, %c0_i32_0 : i32
    scf.if %2 {
      %cst_17 = arith.constant 0.000000e+00 : f32
      %16 = vector.broadcast %cst_17 : f32 to vector<4x128xf32>
      %c0_18 = arith.constant 0 : index
      %c0_19 = arith.constant 0 : index
      %17 = vector.load %arg14[%c0_18, %c0_19] : memref<4x128xf32, #tpu.memory_space<vmem>>, vector<4x128xf32>
      tpu.vector_store %arg14[%c0_18, %c0_19], %16 {strides = array<i32>} : memref<4x128xf32, #tpu.memory_space<vmem>>, vector<4x128xf32>,
      %cst_20 = arith.constant 0.000000e+00 : f32
      %18 = vector.broadcast %cst_20 : f32 to vector<4x128xf32>
      %c0_21 = arith.constant 0 : index
      %c0_22 = arith.constant 0 : index
      %19 = vector.load %arg15[%c0_21, %c0_22] : memref<4x128xf32, #tpu.memory_space<vmem>>, vector<4x128xf32>
      tpu.vector_store %arg15[%c0_21, %c0_22], %18 {strides = array<i32>} : memref<4x128xf32, #tpu.memory_space<vmem>>, vector<4x128xf32>,
    } else {
    }
    %c0 = arith.constant 0 : index
    %c0_1 = arith.constant 0 : index
    %3 = vector.load %arg14[%c0, %c0_1] : memref<4x128xf32, #tpu.memory_space<vmem>>, vector<4x128xf32>
    %c0_2 = arith.constant 0 : index
    %c0_3 = arith.constant 0 : index
    %c0_4 = arith.constant 0 : index
    %4 = vector.load %arg2[%c0_2, %c0_3, %c0_4] : memref<4x96x128xf32, #tpu.memory_space<vmem>>, vector<4x96x128xf32>
    %cst = arith.constant dense<0.000000e+00> : vector<4x128xf32>
    %5 = vector.multi_reduction <add>, %4, %cst [1] : vector<4x96x128xf32> to vector<4x128xf32>
    %6 = arith.addf %3, %5 : vector<4x128xf32>
    %c0_5 = arith.constant 0 : index
    %c0_6 = arith.constant 0 : index
    %7 = vector.load %arg14[%c0_5, %c0_6] : memref<4x128xf32, #tpu.memory_space<vmem>>, vector<4x128xf32>
    tpu.vector_store %arg14[%c0_5, %c0_6], %6 {strides = array<i32>} : memref<4x128xf32, #tpu.memory_space<vmem>>, vector<4x128xf32>,
    %c0_7 = arith.constant 0 : index
    %c0_8 = arith.constant 0 : index
    %8 = vector.load %arg15[%c0_7, %c0_8] : memref<4x128xf32, #tpu.memory_space<vmem>>, vector<4x128xf32>
    %c0_9 = arith.constant 0 : index
    %c0_10 = arith.constant 0 : index
    %c0_11 = arith.constant 0 : index
    %9 = vector.load %arg3[%c0_9, %c0_10, %c0_11] : memref<4x160x128xf32, #tpu.memory_space<vmem>>, vector<4x160x128xf32>
    %cst_12 = arith.constant dense<0.000000e+00> : vector<4x128xf32>
    %10 = vector.multi_reduction <add>, %9, %cst_12 [1] : vector<4x160x128xf32> to vector<4x128xf32>
    %11 = arith.addf %8, %10 : vector<4x128xf32>
    %c0_13 = arith.constant 0 : index
    %c0_14 = arith.constant 0 : index
    %12 = vector.load %arg15[%c0_13, %c0_14] : memref<4x128xf32, #tpu.memory_space<vmem>>, vector<4x128xf32>
    tpu.vector_store %arg15[%c0_13, %c0_14], %11 {strides = array<i32>} : memref<4x128xf32, #tpu.memory_space<vmem>>, vector<4x128xf32>,
    %c0_i32_15 = arith.constant 0 : i32
    %13 = arith.cmpi eq, %arg1, %c0_i32_15 : i32
    %14 = arith.extui %13 : i1 to i32
    %c0_i32_16 = arith.constant 0 : i32
    %15 = arith.cmpi ne, %14, %c0_i32_16 : i32
    scf.if %15 {
      %c0_17 = arith.constant 0 : index
      %c0_18 = arith.constant 0 : index
      %16 = vector.load %arg4[%c0_17, %c0_18] : memref<4x128xf32, #tpu.memory_space<vmem>>, vector<4x128xf32>
      %17 = arith.truncf %16 : vector<4x128xf32> to vector<4x128xbf16>
      %c0_19 = arith.constant 0 : index
      %c0_20 = arith.constant 0 : index
      %18 = vector.load %arg5[%c0_19, %c0_20] : memref<128x128xbf16, #tpu.memory_space<vmem>>, vector<128x128xbf16>
      %cst_21 = arith.constant dense<0.000000e+00> : vector<4x128xf32>
      %19 = tpu.matmul %17, %18, %cst_21 {dimension_numbers = #tpu.dot_dimension_numbers<[1], [0], [0], [1], [0, 0, 1, 1], [], []>} : vector<4x128xbf16>, vector<128x128xbf16>, vector<4x128xf32> -> vector<4x128xf32>
      %c0_22 = arith.constant 0 : index
      %c0_23 = arith.constant 0 : index
      %20 = vector.load %arg6[%c0_22, %c0_23] : memref<1x128xf32, #tpu.memory_space<vmem>>, vector<1x128xf32>
      %21 = vector.broadcast %20 : vector<1x128xf32> to vector<4x128xf32>
      %22 = arith.addf %19, %21 : vector<4x128xf32>
      %c0_24 = arith.constant 0 : index
      %c0_25 = arith.constant 0 : index
      %23 = vector.load %arg14[%c0_24, %c0_25] : memref<4x128xf32, #tpu.memory_space<vmem>>, vector<4x128xf32>
      %24 = arith.truncf %23 : vector<4x128xf32> to vector<4x128xbf16>
      %c0_26 = arith.constant 0 : index
      %c0_27 = arith.constant 0 : index
      %25 = vector.load %arg15[%c0_26, %c0_27] : memref<4x128xf32, #tpu.memory_space<vmem>>, vector<4x128xf32>
      %26 = arith.truncf %25 : vector<4x128xf32> to vector<4x128xbf16>
      %27 = arith.truncf %22 : vector<4x128xf32> to vector<4x128xbf16>
      %28 = tpu.concatenate %24, %26, %27 in 1 : vector<4x128xbf16>, vector<4x128xbf16>, vector<4x128xbf16> -> vector<4x384xbf16>
      %c0_28 = arith.constant 0 : index
      %c0_29 = arith.constant 0 : index
      %29 = vector.load %arg7[%c0_28, %c0_29] : memref<384x128xbf16, #tpu.memory_space<vmem>>, vector<384x128xbf16>
      %cst_30 = arith.constant dense<0.000000e+00> : vector<4x128xf32>
      %30 = tpu.matmul %28, %29, %cst_30 {dimension_numbers = #tpu.dot_dimension_numbers<[1], [0], [0], [1], [0, 0, 1, 1], [], []>} : vector<4x384xbf16>, vector<384x128xbf16>, vector<4x128xf32> -> vector<4x128xf32>
      %c0_31 = arith.constant 0 : index
      %c0_32 = arith.constant 0 : index
      %31 = vector.load %arg8[%c0_31, %c0_32] : memref<1x128xf32, #tpu.memory_space<vmem>>, vector<1x128xf32>
      %32 = vector.broadcast %31 : vector<1x128xf32> to vector<4x128xf32>
      %33 = arith.addf %30, %32 : vector<4x128xf32>
      %cst_33 = arith.constant 0.000000e+00 : f32
      %34 = vector.broadcast %cst_33 : f32 to vector<4x128xf32>
      %35 = arith.maximumf %33, %34 : vector<4x128xf32>
      %36 = arith.truncf %35 : vector<4x128xf32> to vector<4x128xbf16>
      %c0_34 = arith.constant 0 : index
      %c0_35 = arith.constant 0 : index
      %37 = vector.load %arg9[%c0_34, %c0_35] : memref<128x128xbf16, #tpu.memory_space<vmem>>, vector<128x128xbf16>
      %cst_36 = arith.constant dense<0.000000e+00> : vector<4x128xf32>
      %38 = tpu.matmul %36, %37, %cst_36 {dimension_numbers = #tpu.dot_dimension_numbers<[1], [0], [0], [1], [0, 0, 1, 1], [], []>} : vector<4x128xbf16>, vector<128x128xbf16>, vector<4x128xf32> -> vector<4x128xf32>
      %c0_37 = arith.constant 0 : index
      %c0_38 = arith.constant 0 : index
      %39 = vector.load %arg10[%c0_37, %c0_38] : memref<1x128xf32, #tpu.memory_space<vmem>>, vector<1x128xf32>
      %40 = vector.broadcast %39 : vector<1x128xf32> to vector<4x128xf32>
      %41 = arith.addf %38, %40 : vector<4x128xf32>
      %cst_39 = arith.constant 0.000000e+00 : f32
      %42 = vector.broadcast %cst_39 : f32 to vector<4x128xf32>
      %43 = arith.maximumf %41, %42 : vector<4x128xf32>
      %44 = arith.truncf %43 : vector<4x128xf32> to vector<4x128xbf16>
      %c0_40 = arith.constant 0 : index
      %c0_41 = arith.constant 0 : index
      %45 = vector.load %arg11[%c0_40, %c0_41] : memref<128x128xbf16, #tpu.memory_space<vmem>>, vector<128x128xbf16>
      %cst_42 = arith.constant dense<0.000000e+00> : vector<4x128xf32>
      %46 = tpu.matmul %44, %45, %cst_42 {dimension_numbers = #tpu.dot_dimension_numbers<[1], [0], [0], [1], [0, 0, 1, 1], [], []>} : vector<4x128xbf16>, vector<128x128xbf16>, vector<4x128xf32> -> vector<4x128xf32>
      %c0_43 = arith.constant 0 : index
      %c0_44 = arith.constant 0 : index
      %47 = vector.load %arg12[%c0_43, %c0_44] : memref<1x128xf32, #tpu.memory_space<vmem>>, vector<1x128xf32>
      %48 = vector.broadcast %47 : vector<1x128xf32> to vector<4x128xf32>
      %49 = arith.addf %46, %48 : vector<4x128xf32>
      %c0_45 = arith.constant 0 : index
      %c0_46 = arith.constant 0 : index
      %50 = vector.load %arg13[%c0_45, %c0_46] : memref<4x128xf32, #tpu.memory_space<vmem>>, vector<4x128xf32>
      tpu.vector_store %arg13[%c0_45, %c0_46], %49 {strides = array<i32>} : memref<4x128xf32, #tpu.memory_space<vmem>>, vector<4x128xf32>,
    } else {
    }
    return
  }
  func.func @transform_0(%arg0: i32, %arg1: i32) -> (i32, i32, i32) {
    %c0_i32 = arith.constant 0 : i32
    %0 = arith.minsi %arg1, %c0_i32 : i32
    %c0_i32_0 = arith.constant 0 : i32
    %c0_i32_1 = arith.constant 0 : i32
    return %arg0, %0, %c0_i32_0 : i32, i32, i32
  }
  func.func @transform_1(%arg0: i32, %arg1: i32) -> (i32, i32, i32) {
    %c0_i32 = arith.constant 0 : i32
    %0 = arith.minsi %arg1, %c0_i32 : i32
    %c0_i32_0 = arith.constant 0 : i32
    %c0_i32_1 = arith.constant 0 : i32
    return %arg0, %0, %c0_i32_0 : i32, i32, i32
  }
  func.func @transform_2(%arg0: i32, %arg1: i32) -> (i32, i32) {
    %c0_i32 = arith.constant 0 : i32
    %c0_i32_0 = arith.constant 0 : i32
    return %arg0, %c0_i32 : i32, i32
  }
  func.func @transform_3(%arg0: i32, %arg1: i32) -> (i32, i32) {
    %c0_i32 = arith.constant 0 : i32
    %c0_i32_0 = arith.constant 0 : i32
    %c0_i32_1 = arith.constant 0 : i32
    return %c0_i32, %c0_i32_0 : i32, i32
  }
  func.func @transform_4(%arg0: i32, %arg1: i32) -> (i32, i32) {
    %c0_i32 = arith.constant 0 : i32
    %c0_i32_0 = arith.constant 0 : i32
    %c0_i32_1 = arith.constant 0 : i32
    return %c0_i32, %c0_i32_0 : i32, i32
  }
  func.func @transform_5(%arg0: i32, %arg1: i32) -> (i32, i32) {
    %c0_i32 = arith.constant 0 : i32
    %c0_i32_0 = arith.constant 0 : i32
    %c0_i32_1 = arith.constant 0 : i32
    return %c0_i32, %c0_i32_0 : i32, i32
  }
  func.func @transform_6(%arg0: i32, %arg1: i32) -> (i32, i32) {
    %c0_i32 = arith.constant 0 : i32
    %c0_i32_0 = arith.constant 0 : i32
    %c0_i32_1 = arith.constant 0 : i32
    return %c0_i32, %c0_i32_0 : i32, i32
  }
  func.func @transform_7(%arg0: i32, %arg1: i32) -> (i32, i32) {
    %c0_i32 = arith.constant 0 : i32
    %c0_i32_0 = arith.constant 0 : i32
    %c0_i32_1 = arith.constant 0 : i32
    return %c0_i32, %c0_i32_0 : i32, i32
  }
  func.func @transform_8(%arg0: i32, %arg1: i32) -> (i32, i32) {
    %c0_i32 = arith.constant 0 : i32
    %c0_i32_0 = arith.constant 0 : i32
    %c0_i32_1 = arith.constant 0 : i32
    return %c0_i32, %c0_i32_0 : i32, i32
  }
  func.func @transform_9(%arg0: i32, %arg1: i32) -> (i32, i32) {
    %c0_i32 = arith.constant 0 : i32
    %c0_i32_0 = arith.constant 0 : i32
    %c0_i32_1 = arith.constant 0 : i32
    return %c0_i32, %c0_i32_0 : i32, i32
  }
  func.func @transform_10(%arg0: i32, %arg1: i32) -> (i32, i32) {
    %c0_i32 = arith.constant 0 : i32
    %c0_i32_0 = arith.constant 0 : i32
    %c0_i32_1 = arith.constant 0 : i32
    return %c0_i32, %c0_i32_0 : i32, i32
  }
  func.func @transform_11(%arg0: i32, %arg1: i32) -> (i32, i32) {
    %c0_i32 = arith.constant 0 : i32
    %c0_i32_0 = arith.constant 0 : i32
    return %arg0, %c0_i32 : i32, i32
  }
}

</mosaic_0001>

<llo_original>
// kernel: tpu_custom_call.1
$region0: #{tpu_custom_call.1}
  #allocation0 [shape = 'u32[]', space=smem, size = 0x4, offset = 0x4, fixed_abs, tag = 'smem constant byte address 0x4 - core index']
  #allocation1 [shape = 'u32[144,128]{1,0:T(1,128)}', space=vmem, size = 0x12000, scoped, tag = 'internal scratch']
  #allocation2 [shape = 'f32[4,128]{1,0:T(4,128)}', space=vmem, size = 0x800, scoped, tag = 'scratch operand']
  #allocation3 [shape = 'f32[4,128]{1,0:T(4,128)}', space=vmem, size = 0x800, scoped, tag = 'scratch operand']
  %s0 = inlined_call_operand.hbm [shape: f32[4,96,128], index: 0, kind: input, shape index: {}]
  %s1 = inlined_call_operand.hbm [shape: f32[4,160,128], index: 1, kind: input, shape index: {}]
  %s2 = inlined_call_operand.vmem [shape: f32[4,128], index: 2, kind: input, shape index: {}]
  %s3 = inlined_call_operand.hbm [shape: bf16[128,128], index: 3, kind: input, shape index: {}]
  %s4 = inlined_call_operand.vmem [shape: f32[1,128], index: 4, kind: input, shape index: {}]
  %s5 = inlined_call_operand.hbm [shape: bf16[384,128], index: 5, kind: input, shape index: {}]
  %s6 = inlined_call_operand.vmem [shape: f32[1,128], index: 6, kind: input, shape index: {}]
  %s7 = inlined_call_operand.hbm [shape: bf16[128,128], index: 7, kind: input, shape index: {}]
  %s8 = inlined_call_operand.vmem [shape: f32[1,128], index: 8, kind: input, shape index: {}]
  %s9 = inlined_call_operand.hbm [shape: bf16[128,128], index: 9, kind: input, shape index: {}]
  %s10 = inlined_call_operand.vmem [shape: f32[1,128], index: 10, kind: input, shape index: {}]
  %s11 = inlined_call_operand.hbm [shape: f32[4,128], index: 11, kind: output, shape index: {}]
  %s12 = sld [smem:[#allocation0]]
  $region86: #{tpu_custom_call.1} parent=0
    _
  %s14 = ssub.s32 1, %s12
  %s15 = scalar_select 0, %s14, %s12
  $region1: #{tpu_custom_call.1} parent=0
    #allocation4 [shape = 'u8[196608]{0}', space=vmem, size = 0x30000, scoped, tag = 'input window, operand 0, single buffered']
    #allocation5 [shape = 's32[1]{0}', space=sflag, size = 0x4, scoped, tag = 'scoped memory for tpu_custom_call.1']
    #allocation6 [shape = 's32[1]{0}', space=sflag, size = 0x4, scoped, tag = 'scoped memory for tpu_custom_call.1']
    #allocation7 [shape = 'u8[327680]{0}', space=vmem, size = 0x50000, scoped, tag = 'input window, operand 1, single buffered']
    #allocation8 [shape = 's32[1]{0}', space=sflag, size = 0x4, scoped, tag = 'scoped memory for tpu_custom_call.1']
    #allocation9 [shape = 'u8[32768]{0}', space=vmem, size = 0x8000, scoped, tag = 'input window, operand 3, single buffered']
    #allocation10 [shape = 'u8[98304]{0}', space=vmem, size = 0x18000, scoped, tag = 'input window, operand 5, single buffered']
    #allocation11 [shape = 's32[1]{0}', space=sflag, size = 0x4, scoped, tag = 'scoped memory for tpu_custom_call.1']
    #allocation12 [shape = 'u8[32768]{0}', space=vmem, size = 0x8000, scoped, tag = 'input window, operand 7, single buffered']
    #allocation13 [shape = 'u8[32768]{0}', space=vmem, size = 0x8000, scoped, tag = 'input window, operand 9, single buffered']
    #allocation14 [shape = 's32[1]{0}', space=sflag, size = 0x4, scoped, tag = 'scoped memory for tpu_custom_call.1']
    #allocation15 [shape = 'u8[2048]{0}', space=vmem, size = 0x800, scoped, tag = 'output window, operand 0, single buffered']
    %16 = vsyncpa [#allocation5], 0
    %17 = vsyncpa [#allocation8], 0
    %18 = vsyncpa [#allocation11], 0
    %19 = vsyncpa [#allocation14], 0
    %20 = vsyncpa [#allocation6], 0
    // Predicated region
    $region2: #{tpu_custom_call.1} parent=1 // pred_check
      _
    $region3: #{tpu_custom_call.1} parent=1 // pred_check_branch
      %22 = sbr.rel (0) target = $region5
    $region4: #{tpu_custom_call.1} parent=1 // pred_region
      %s24 = ssub.s32 6144, 6144
      %25 = vsyncadd [#allocation5], %s24
      %s26 = sshll.u32 [#allocation4], 4
      %s27 = int_to_ptr.vmem [resolvable:$true] %s26
      %32 = dma.hbm_to_vmem [thread:$0]  %s0, 6144, %s27, [#allocation5], 128, 128, 8
    $region5: #{tpu_custom_call.1} parent=1 // pred_fallthru
      _
    // Predicated region
    $region6: #{tpu_custom_call.1} parent=1 // pred_check
      _
    $region7: #{tpu_custom_call.1} parent=1 // pred_check_branch
      %34 = sbr.rel (0) target = $region9
    $region8: #{tpu_custom_call.1} parent=1 // pred_region
      %s36 = ssub.s32 10240, 10240
      %37 = vsyncadd [#allocation8], %s36
      %s38 = sshll.u32 [#allocation7], 4
      %s39 = int_to_ptr.vmem [resolvable:$true] %s38
      %44 = dma.hbm_to_vmem [thread:$0]  %s1, 10240, %s39, [#allocation8], 128, 128, 8
    $region9: #{tpu_custom_call.1} parent=1 // pred_fallthru
      _
    // Predicated region
    $region10: #{tpu_custom_call.1} parent=1 // pred_check
      _
    $region11: #{tpu_custom_call.1} parent=1 // pred_check_branch
      %46 = sbr.rel (0) target = $region13
    $region12: #{tpu_custom_call.1} parent=1 // pred_region
      _
    $region13: #{tpu_custom_call.1} parent=1 // pred_fallthru
      _
    // Predicated region
    $region14: #{tpu_custom_call.1} parent=1 // pred_check
      _
    $region15: #{tpu_custom_call.1} parent=1 // pred_check_branch
      %48 = sbr.rel (0) target = $region17
    $region16: #{tpu_custom_call.1} parent=1 // pred_region
      %s50 = ssub.s32 1024, 1024
      %51 = vsyncadd [#allocation8], %s50
      %s52 = sshll.u32 [#allocation9], 4
      %s53 = int_to_ptr.vmem [resolvable:$true] %s52
      %58 = dma.hbm_to_vmem [thread:$0]  %s3, 1024, %s53, [#allocation8], 64, 64, 4
    $region17: #{tpu_custom_call.1} parent=1 // pred_fallthru
      _
    // Predicated region
    $region18: #{tpu_custom_call.1} parent=1 // pred_check
      _
    $region19: #{tpu_custom_call.1} parent=1 // pred_check_branch
      %60 = sbr.rel (0) target = $region21
    $region20: #{tpu_custom_call.1} parent=1 // pred_region
      _
    $region21: #{tpu_custom_call.1} parent=1 // pred_fallthru
      _
    // Predicated region
    $region22: #{tpu_custom_call.1} parent=1 // pred_check
      _
    $region23: #{tpu_custom_call.1} parent=1 // pred_check_branch
      %62 = sbr.rel (0) target = $region25
    $region24: #{tpu_custom_call.1} parent=1 // pred_region
      %s64 = ssub.s32 3072, 3072
      %65 = vsyncadd [#allocation11], %s64
      %s66 = sshll.u32 [#allocation10], 4
      %s67 = int_to_ptr.vmem [resolvable:$true] %s66
      %72 = dma.hbm_to_vmem [thread:$0]  %s5, 3072, %s67, [#allocation11], 64, 64, 4
    $region25: #{tpu_custom_call.1} parent=1 // pred_fallthru
      _
    // Predicated region
    $region26: #{tpu_custom_call.1} parent=1 // pred_check
      _
    $region27: #{tpu_custom_call.1} parent=1 // pred_check_branch
      %74 = sbr.rel (0) target = $region29
    $region28: #{tpu_custom_call.1} parent=1 // pred_region
      _
    $region29: #{tpu_custom_call.1} parent=1 // pred_fallthru
      _
    // Predicated region
    $region30: #{tpu_custom_call.1} parent=1 // pred_check
      _
    $region31: #{tpu_custom_call.1} parent=1 // pred_check_branch
      %76 = sbr.rel (0) target = $region33
    $region32: #{tpu_custom_call.1} parent=1 // pred_region
      %s78 = ssub.s32 1024, 1024
      %79 = vsyncadd [#allocation11], %s78
      %s80 = sshll.u32 [#allocation12], 4
      %s81 = int_to_ptr.vmem [resolvable:$true] %s80
      %86 = dma.hbm_to_vmem [thread:$0]  %s7, 1024, %s81, [#allocation11], 64, 64, 4
    $region33: #{tpu_custom_call.1} parent=1 // pred_fallthru
      _
    // Predicated region
    $region34: #{tpu_custom_call.1} parent=1 // pred_check
      _
    $region35: #{tpu_custom_call.1} parent=1 // pred_check_branch
      %88 = sbr.rel (0) target = $region37
    $region36: #{tpu_custom_call.1} parent=1 // pred_region
      _
    $region37: #{tpu_custom_call.1} parent=1 // pred_fallthru
      _
    // Predicated region
    $region38: #{tpu_custom_call.1} parent=1 // pred_check
      _
    $region39: #{tpu_custom_call.1} parent=1 // pred_check_branch
      %90 = sbr.rel (0) target = $region41
    $region40: #{tpu_custom_call.1} parent=1 // pred_region
      %s92 = ssub.s32 1024, 1024
      %93 = vsyncadd [#allocation14], %s92
      %s94 = sshll.u32 [#allocation13], 4
      %s95 = int_to_ptr.vmem [resolvable:$true] %s94
      %100 = dma.hbm_to_vmem [thread:$0]  %s9, 1024, %s95, [#allocation14], 64, 64, 4
    $region41: #{tpu_custom_call.1} parent=1 // pred_fallthru
      _
    // Predicated region
    $region42: #{tpu_custom_call.1} parent=1 // pred_check
      _
    $region43: #{tpu_custom_call.1} parent=1 // pred_check_branch
      %102 = sbr.rel (0) target = $region45
    $region44: #{tpu_custom_call.1} parent=1 // pred_region
      _
    $region45: #{tpu_custom_call.1} parent=1 // pred_fallthru
      _
    // Predicated region
    $region46: #{tpu_custom_call.1} parent=1 // pred_check
      _
    $region47: #{tpu_custom_call.1} parent=1 // pred_check_branch
      %104 = sbr.rel (0) target = $region49
    $region48: #{tpu_custom_call.1} parent=1 // pred_region
      %105 = dma.done [#allocation5], 6144
    $region49: #{tpu_custom_call.1} parent=1 // pred_fallthru
      _
    // Predicated region
    $region50: #{tpu_custom_call.1} parent=1 // pred_check
      _
    $region51: #{tpu_custom_call.1} parent=1 // pred_check_branch
      %107 = sbr.rel (0) target = $region53
    $region52: #{tpu_custom_call.1} parent=1 // pred_region
      %108 = dma.done [#allocation8], 10240
    $region53: #{tpu_custom_call.1} parent=1 // pred_fallthru
      _
    // Predicated region
    $region54: #{tpu_custom_call.1} parent=1 // pred_check
      _
    $region55: #{tpu_custom_call.1} parent=1 // pred_check_branch
      %110 = sbr.rel (0) target = $region57
    $region56: #{tpu_custom_call.1} parent=1 // pred_region
      %111 = dma.done [#allocation8], 1024
    $region57: #{tpu_custom_call.1} parent=1 // pred_fallthru
      _
    // Predicated region
    $region58: #{tpu_custom_call.1} parent=1 // pred_check
      _
    $region59: #{tpu_custom_call.1} parent=1 // pred_check_branch
      %113 = sbr.rel (0) target = $region61
    $region60: #{tpu_custom_call.1} parent=1 // pred_region
      %114 = dma.done [#allocation11], 3072
    $region61: #{tpu_custom_call.1} parent=1 // pred_fallthru
      _
    // Predicated region
    $region62: #{tpu_custom_call.1} parent=1 // pred_check
      _
    $region63: #{tpu_custom_call.1} parent=1 // pred_check_branch
      %116 = sbr.rel (0) target = $region65
    $region64: #{tpu_custom_call.1} parent=1 // pred_region
      %117 = dma.done [#allocation11], 1024
    $region65: #{tpu_custom_call.1} parent=1 // pred_fallthru
      _
    // Predicated region
    $region66: #{tpu_custom_call.1} parent=1 // pred_check
      _
    $region67: #{tpu_custom_call.1} parent=1 // pred_check_branch
      %119 = sbr.rel (0) target = $region69
    $region68: #{tpu_custom_call.1} parent=1 // pred_region
      %120 = dma.done [#allocation14], 1024
    $region69: #{tpu_custom_call.1} parent=1 // pred_fallthru
      _
    %p122 = scmp.eq.s32.totalorder 0, 0
    // Predicated region
    $region70: #{tpu_custom_call.1} parent=1 // pred_check
      %p123 = pneg %p122
    $region71: #{tpu_custom_call.1} parent=1 // pred_check_branch
      %125 = sbr.rel (%p123) target = $region73
    $region72: #{tpu_custom_call.1} parent=1 // pred_region
      %126 = vst [vmem:[#allocation2] sm:$0xf] 0.0
      %127 = vst [vmem:[#allocation3] sm:$0xf] 0.0
    $region73: #{tpu_custom_call.1} parent=1 // pred_fallthru
      _
    %v128 = vld [vmem:[#allocation2] sm:$0xf]
    %v129 = vld [vmem:[#allocation4] sm:$0xff]
    %v130 = vld [vmem:[#allocation4 + $0x8] sm:$0xff]
    %v131 = vld [vmem:[#allocation4 + $0x10] sm:$0xff]
    %v132 = vld [vmem:[#allocation4 + $0x18] sm:$0xff]
    %v133 = vld [vmem:[#allocation4 + $0x20] sm:$0xff]
    %v134 = vld [vmem:[#allocation4 + $0x28] sm:$0xff]
    %v135 = vld [vmem:[#allocation4 + $0x30] sm:$0xff]
    %v136 = vld [vmem:[#allocation4 + $0x38] sm:$0xff]
    %v137 = vld [vmem:[#allocation4 + $0x40] sm:$0xff]
    %v138 = vld [vmem:[#allocation4 + $0x48] sm:$0xff]
    %v139 = vld [vmem:[#allocation4 + $0x50] sm:$0xff]
    %v140 = vld [vmem:[#allocation4 + $0x58] sm:$0xff]
    %v141 = vld [vmem:[#allocation4 + $0x60] sm:$0xff]
    %v142 = vld [vmem:[#allocation4 + $0x68] sm:$0xff]
    %v143 = vld [vmem:[#allocation4 + $0x70] sm:$0xff]
    %v144 = vld [vmem:[#allocation4 + $0x78] sm:$0xff]
    %v145 = vld [vmem:[#allocation4 + $0x80] sm:$0xff]
    %v146 = vld [vmem:[#allocation4 + $0x88] sm:$0xff]
    %v147 = vld [vmem:[#allocation4 + $0x90] sm:$0xff]
    %v148 = vld [vmem:[#allocation4 + $0x98] sm:$0xff]
    %v149 = vld [vmem:[#allocation4 + $0xa0] sm:$0xff]
    %v150 = vld [vmem:[#allocation4 + $0xa8] sm:$0xff]
    %v151 = vld [vmem:[#allocation4 + $0xb0] sm:$0xff]
    %v152 = vld [vmem:[#allocation4 + $0xb8] sm:$0xff]
    %v153 = vld [vmem:[#allocation4 + $0xc0] sm:$0xff]
    %v154 = vld [vmem:[#allocation4 + $0xc8] sm:$0xff]
    %v155 = vld [vmem:[#allocation4 + $0xd0] sm:$0xff]
    %v156 = vld [vmem:[#allocation4 + $0xd8] sm:$0xff]
    %v157 = vld [vmem:[#allocation4 + $0xe0] sm:$0xff]
    %v158 = vld [vmem:[#allocation4 + $0xe8] sm:$0xff]
    %v159 = vld [vmem:[#allocation4 + $0xf0] sm:$0xff]
    %v160 = vld [vmem:[#allocation4 + $0xf8] sm:$0xff]
    %v161 = vld [vmem:[#allocation4 + $0x100] sm:$0xff]
    %v162 = vld [vmem:[#allocation4 + $0x108] sm:$0xff]
    %v163 = vld [vmem:[#allocation4 + $0x110] sm:$0xff]
    %v164 = vld [vmem:[#allocation4 + $0x118] sm:$0xff]
    %v165 = vld [vmem:[#allocation4 + $0x120] sm:$0xff]
    %v166 = vld [vmem:[#allocation4 + $0x128] sm:$0xff]
    %v167 = vld [vmem:[#allocation4 + $0x130] sm:$0xff]
    %v168 = vld [vmem:[#allocation4 + $0x138] sm:$0xff]
    %v169 = vld [vmem:[#allocation4 + $0x140] sm:$0xff]
    %v170 = vld [vmem:[#allocation4 + $0x148] sm:$0xff]
    %v171 = vld [vmem:[#allocation4 + $0x150] sm:$0xff]
    %v172 = vld [vmem:[#allocation4 + $0x158] sm:$0xff]
    %v173 = vld [vmem:[#allocation4 + $0x160] sm:$0xff]
    %v174 = vld [vmem:[#allocation4 + $0x168] sm:$0xff]
    %v175 = vld [vmem:[#allocation4 + $0x170] sm:$0xff]
    %v176 = vld [vmem:[#allocation4 + $0x178] sm:$0xff]
    %v177 = vadd.f32 %v129, %v130
    %v178 = vadd.f32 %v177, %v131
    %v179 = vadd.f32 %v178, %v132
    %v180 = vadd.f32 %v179, %v133
    %v181 = vadd.f32 %v180, %v134
    %v182 = vadd.f32 %v181, %v135
    %v183 = vadd.f32 %v182, %v136
    %v184 = vadd.f32 %v183, %v137
    %v185 = vadd.f32 %v184, %v138
    %v186 = vadd.f32 %v185, %v139
    %v187 = vadd.f32 %v186, %v140
    %v188 = vrot.slane %v187, 4
    %v189 = vadd.f32 %v187, %v188
    %v190 = vrot.slane %v189, 2
    %v191 = vadd.f32 %v189, %v190
    %v192 = vrot.slane %v191, 1
    %v193 = vadd.f32 %v191, %v192
    %v194 = vadd.f32 %v141, %v142
    %v195 = vadd.f32 %v194, %v143
    %v196 = vadd.f32 %v195, %v144
    %v197 = vadd.f32 %v196, %v145
    %v198 = vadd.f32 %v197, %v146
    %v199 = vadd.f32 %v198, %v147
    %v200 = vadd.f32 %v199, %v148
    %v201 = vadd.f32 %v200, %v149
    %v202 = vadd.f32 %v201, %v150
    %v203 = vadd.f32 %v202, %v151
    %v204 = vadd.f32 %v203, %v152
    %v205 = vrot.slane %v204, 4
    %v206 = vadd.f32 %v204, %v205
    %v207 = vrot.slane %v206, 2
    %v208 = vadd.f32 %v206, %v207
    %v209 = vrot.slane %v208, 1
    %v210 = vadd.f32 %v208, %v209
    %v211 = vadd.f32 %v153, %v154
    %v212 = vadd.f32 %v211, %v155
    %v213 = vadd.f32 %v212, %v156
    %v214 = vadd.f32 %v213, %v157
    %v215 = vadd.f32 %v214, %v158
    %v216 = vadd.f32 %v215, %v159
    %v217 = vadd.f32 %v216, %v160
    %v218 = vadd.f32 %v217, %v161
    %v219 = vadd.f32 %v218, %v162
    %v220 = vadd.f32 %v219, %v163
    %v221 = vadd.f32 %v220, %v164
    %v222 = vrot.slane %v221, 4
    %v223 = vadd.f32 %v221, %v222
    %v224 = vrot.slane %v223, 2
    %v225 = vadd.f32 %v223, %v224
    %v226 = vrot.slane %v225, 1
    %v227 = vadd.f32 %v225, %v226
    %v228 = vadd.f32 %v165, %v166
    %v229 = vadd.f32 %v228, %v167
    %v230 = vadd.f32 %v229, %v168
    %v231 = vadd.f32 %v230, %v169
    %v232 = vadd.f32 %v231, %v170
    %v233 = vadd.f32 %v232, %v171
    %v234 = vadd.f32 %v233, %v172
    %v235 = vadd.f32 %v234, %v173
    %v236 = vadd.f32 %v235, %v174
    %v237 = vadd.f32 %v236, %v175
    %v238 = vadd.f32 %v237, %v176
    %v239 = vrot.slane %v238, 4
    %v240 = vadd.f32 %v238, %v239
    %v241 = vrot.slane %v240, 2
    %v242 = vadd.f32 %v240, %v241
    %v243 = vrot.slane %v242, 1
    %v244 = vadd.f32 %v242, %v243
    %vm249 = vcmask 1041409
    %v250 = vsel %vm249, %v210, %v193
    %vm251 = vcmask 1042434
    %v252 = vsel %vm251, %v227, %v250
    %vm253 = vcmask 1043459
    %v254 = vsel %vm253, %v244, %v252
    %v256 = vadd.f32 %v128, %v254
    %257 = vst [vmem:[#allocation2] sm:$0xf] %v256
    %v258 = vld [vmem:[#allocation3] sm:$0xf]
    %v259 = vld [vmem:[#allocation7] sm:$0xff]
    %v260 = vld [vmem:[#allocation7 + $0x8] sm:$0xff]
    %v261 = vld [vmem:[#allocation7 + $0x10] sm:$0xff]
    %v262 = vld [vmem:[#allocation7 + $0x18] sm:$0xff]
    %v263 = vld [vmem:[#allocation7 + $0x20] sm:$0xff]
    %v264 = vld [vmem:[#allocation7 + $0x28] sm:$0xff]
    %v265 = vld [vmem:[#allocation7 + $0x30] sm:$0xff]
    %v266 = vld [vmem:[#allocation7 + $0x38] sm:$0xff]
    %v267 = vld [vmem:[#allocation7 + $0x40] sm:$0xff]
    %v268 = vld [vmem:[#allocation7 + $0x48] sm:$0xff]
    %v269 = vld [vmem:[#allocation7 + $0x50] sm:$0xff]
    %v270 = vld [vmem:[#allocation7 + $0x58] sm:$0xff]
    %v271 = vld [vmem:[#allocation7 + $0x60] sm:$0xff]
    %v272 = vld [vmem:[#allocation7 + $0x68] sm:$0xff]
    %v273 = vld [vmem:[#allocation7 + $0x70] sm:$0xff]
    %v274 = vld [vmem:[#allocation7 + $0x78] sm:$0xff]
    %v275 = vld [vmem:[#allocation7 + $0x80] sm:$0xff]
    %v276 = vld [vmem:[#allocation7 + $0x88] sm:$0xff]
    %v277 = vld [vmem:[#allocation7 + $0x90] sm:$0xff]
    %v278 = vld [vmem:[#allocation7 + $0x98] sm:$0xff]
    %v279 = vld [vmem:[#allocation7 + $0xa0] sm:$0xff]
    %v280 = vld [vmem:[#allocation7 + $0xa8] sm:$0xff]
    %v281 = vld [vmem:[#allocation7 + $0xb0] sm:$0xff]
    %v282 = vld [vmem:[#allocation7 + $0xb8] sm:$0xff]
    %v283 = vld [vmem:[#allocation7 + $0xc0] sm:$0xff]
    %v284 = vld [vmem:[#allocation7 + $0xc8] sm:$0xff]
    %v285 = vld [vmem:[#allocation7 + $0xd0] sm:$0xff]
    %v286 = vld [vmem:[#allocation7 + $0xd8] sm:$0xff]
    %v287 = vld [vmem:[#allocation7 + $0xe0] sm:$0xff]
    %v288 = vld [vmem:[#allocation7 + $0xe8] sm:$0xff]
    %v289 = vld [vmem:[#allocation7 + $0xf0] sm:$0xff]
    %v290 = vld [vmem:[#allocation7 + $0xf8] sm:$0xff]
    %v291 = vld [vmem:[#allocation7 + $0x100] sm:$0xff]
    %v292 = vld [vmem:[#allocation7 + $0x108] sm:$0xff]
    %v293 = vld [vmem:[#allocation7 + $0x110] sm:$0xff]
    %v294 = vld [vmem:[#allocation7 + $0x118] sm:$0xff]
    %v295 = vld [vmem:[#allocation7 + $0x120] sm:$0xff]
    %v296 = vld [vmem:[#allocation7 + $0x128] sm:$0xff]
    %v297 = vld [vmem:[#allocation7 + $0x130] sm:$0xff]
    %v298 = vld [vmem:[#allocation7 + $0x138] sm:$0xff]
    %v299 = vld [vmem:[#allocation7 + $0x140] sm:$0xff]
    %v300 = vld [vmem:[#allocation7 + $0x148] sm:$0xff]
    %v301 = vld [vmem:[#allocation7 + $0x150] sm:$0xff]
    %v302 = vld [vmem:[#allocation7 + $0x158] sm:$0xff]
    %v303 = vld [vmem:[#allocation7 + $0x160] sm:$0xff]
    %v304 = vld [vmem:[#allocation7 + $0x168] sm:$0xff]
    %v305 = vld [vmem:[#allocation7 + $0x170] sm:$0xff]
    %v306 = vld [vmem:[#allocation7 + $0x178] sm:$0xff]
    %v307 = vld [vmem:[#allocation7 + $0x180] sm:$0xff]
    %v308 = vld [vmem:[#allocation7 + $0x188] sm:$0xff]
    %v309 = vld [vmem:[#allocation7 + $0x190] sm:$0xff]
    %v310 = vld [vmem:[#allocation7 + $0x198] sm:$0xff]
    %v311 = vld [vmem:[#allocation7 + $0x1a0] sm:$0xff]
    %v312 = vld [vmem:[#allocation7 + $0x1a8] sm:$0xff]
    %v313 = vld [vmem:[#allocation7 + $0x1b0] sm:$0xff]
    %v314 = vld [vmem:[#allocation7 + $0x1b8] sm:$0xff]
    %v315 = vld [vmem:[#allocation7 + $0x1c0] sm:$0xff]
    %v316 = vld [vmem:[#allocation7 + $0x1c8] sm:$0xff]
    %v317 = vld [vmem:[#allocation7 + $0x1d0] sm:$0xff]
    %v318 = vld [vmem:[#allocation7 + $0x1d8] sm:$0xff]
    %v319 = vld [vmem:[#allocation7 + $0x1e0] sm:$0xff]
    %v320 = vld [vmem:[#allocation7 + $0x1e8] sm:$0xff]
    %v321 = vld [vmem:[#allocation7 + $0x1f0] sm:$0xff]
    %v322 = vld [vmem:[#allocation7 + $0x1f8] sm:$0xff]
    %v323 = vld [vmem:[#allocation7 + $0x200] sm:$0xff]
    %v324 = vld [vmem:[#allocation7 + $0x208] sm:$0xff]
    %v325 = vld [vmem:[#allocation7 + $0x210] sm:$0xff]
    %v326 = vld [vmem:[#allocation7 + $0x218] sm:$0xff]
    %v327 = vld [vmem:[#allocation7 + $0x220] sm:$0xff]
    %v328 = vld [vmem:[#allocation7 + $0x228] sm:$0xff]
    %v329 = vld [vmem:[#allocation7 + $0x230] sm:$0xff]
    %v330 = vld [vmem:[#allocation7 + $0x238] sm:$0xff]
    %v331 = vld [vmem:[#allocation7 + $0x240] sm:$0xff]
    %v332 = vld [vmem:[#allocation7 + $0x248] sm:$0xff]
    %v333 = vld [vmem:[#allocation7 + $0x250] sm:$0xff]
    %v334 = vld [vmem:[#allocation7 + $0x258] sm:$0xff]
    %v335 = vld [vmem:[#allocation7 + $0x260] sm:$0xff]
    %v336 = vld [vmem:[#allocation7 + $0x268] sm:$0xff]
    %v337 = vld [vmem:[#allocation7 + $0x270] sm:$0xff]
    %v338 = vld [vmem:[#allocation7 + $0x278] sm:$0xff]
    %v339 = vadd.f32 %v259, %v260
    %v340 = vadd.f32 %v339, %v261
    %v341 = vadd.f32 %v340, %v262
    %v342 = vadd.f32 %v341, %v263
    %v343 = vadd.f32 %v342, %v264
    %v344 = vadd.f32 %v343, %v265
    %v345 = vadd.f32 %v344, %v266
    %v346 = vadd.f32 %v345, %v267
    %v347 = vadd.f32 %v346, %v268
    %v348 = vadd.f32 %v347, %v269
    %v349 = vadd.f32 %v348, %v270
    %v350 = vadd.f32 %v349, %v271
    %v351 = vadd.f32 %v350, %v272
    %v352 = vadd.f32 %v351, %v273
    %v353 = vadd.f32 %v352, %v274
    %v354 = vadd.f32 %v353, %v275
    %v355 = vadd.f32 %v354, %v276
    %v356 = vadd.f32 %v355, %v277
    %v357 = vadd.f32 %v356, %v278
    %v358 = vrot.slane %v357, 4
    %v359 = vadd.f32 %v357, %v358
    %v360 = vrot.slane %v359, 2
    %v361 = vadd.f32 %v359, %v360
    %v362 = vrot.slane %v361, 1
    %v363 = vadd.f32 %v361, %v362
    %v364 = vadd.f32 %v279, %v280
    %v365 = vadd.f32 %v364, %v281
    %v366 = vadd.f32 %v365, %v282
    %v367 = vadd.f32 %v366, %v283
    %v368 = vadd.f32 %v367, %v284
    %v369 = vadd.f32 %v368, %v285
    %v370 = vadd.f32 %v369, %v286
    %v371 = vadd.f32 %v370, %v287
    %v372 = vadd.f32 %v371, %v288
    %v373 = vadd.f32 %v372, %v289
    %v374 = vadd.f32 %v373, %v290
    %v375 = vadd.f32 %v374, %v291
    %v376 = vadd.f32 %v375, %v292
    %v377 = vadd.f32 %v376, %v293
    %v378 = vadd.f32 %v377, %v294
    %v379 = vadd.f32 %v378, %v295
    %v380 = vadd.f32 %v379, %v296
    %v381 = vadd.f32 %v380, %v297
    %v382 = vadd.f32 %v381, %v298
    %v383 = vrot.slane %v382, 4
    %v384 = vadd.f32 %v382, %v383
    %v385 = vrot.slane %v384, 2
    %v386 = vadd.f32 %v384, %v385
    %v387 = vrot.slane %v386, 1
    %v388 = vadd.f32 %v386, %v387
    %v389 = vadd.f32 %v299, %v300
    %v390 = vadd.f32 %v389, %v301
    %v391 = vadd.f32 %v390, %v302
    %v392 = vadd.f32 %v391, %v303
    %v393 = vadd.f32 %v392, %v304
    %v394 = vadd.f32 %v393, %v305
    %v395 = vadd.f32 %v394, %v306
    %v396 = vadd.f32 %v395, %v307
    %v397 = vadd.f32 %v396, %v308
    %v398 = vadd.f32 %v397, %v309
    %v399 = vadd.f32 %v398, %v310
    %v400 = vadd.f32 %v399, %v311
    %v401 = vadd.f32 %v400, %v312
    %v402 = vadd.f32 %v401, %v313
    %v403 = vadd.f32 %v402, %v314
    %v404 = vadd.f32 %v403, %v315
    %v405 = vadd.f32 %v404, %v316
    %v406 = vadd.f32 %v405, %v317
    %v407 = vadd.f32 %v406, %v318
    %v408 = vrot.slane %v407, 4
    %v409 = vadd.f32 %v407, %v408
    %v410 = vrot.slane %v409, 2
    %v411 = vadd.f32 %v409, %v410
    %v412 = vrot.slane %v411, 1
    %v413 = vadd.f32 %v411, %v412
    %v414 = vadd.f32 %v319, %v320
    %v415 = vadd.f32 %v414, %v321
    %v416 = vadd.f32 %v415, %v322
    %v417 = vadd.f32 %v416, %v323
    %v418 = vadd.f32 %v417, %v324
    %v419 = vadd.f32 %v418, %v325
    %v420 = vadd.f32 %v419, %v326
    %v421 = vadd.f32 %v420, %v327
    %v422 = vadd.f32 %v421, %v328
    %v423 = vadd.f32 %v422, %v329
    %v424 = vadd.f32 %v423, %v330
    %v425 = vadd.f32 %v424, %v331
    %v426 = vadd.f32 %v425, %v332
    %v427 = vadd.f32 %v426, %v333
    %v428 = vadd.f32 %v427, %v334
    %v429 = vadd.f32 %v428, %v335
    %v430 = vadd.f32 %v429, %v336
    %v431 = vadd.f32 %v430, %v337
    %v432 = vadd.f32 %v431, %v338
    %v433 = vrot.slane %v432, 4
    %v434 = vadd.f32 %v432, %v433
    %v435 = vrot.slane %v434, 2
    %v436 = vadd.f32 %v434, %v435
    %v437 = vrot.slane %v436, 1
    %v438 = vadd.f32 %v436, %v437
    %v443 = vsel %vm249, %v388, %v363
    %v444 = vsel %vm251, %v413, %v443
    %v445 = vsel %vm253, %v438, %v444
    %v447 = vadd.f32 %v258, %v445
    %448 = vst [vmem:[#allocation3] sm:$0xf] %v447
    // Predicated region
    $region74: #{tpu_custom_call.1} parent=1 // pred_check
      %p449 = pneg %p122
    $region75: #{tpu_custom_call.1} parent=1 // pred_check_branch
      %451 = sbr.rel (%p449) target = $region77
    $region76: #{tpu_custom_call.1} parent=1 // pred_region
      %v452 = vld [vmem:[%s2] sm:$0xf]
      %v453 = vpack.c.bf16 %v452, %v452
      %v454 = vld [vmem:[#allocation9] sm:$0xf]
      %v455 = vld [vmem:[#allocation9 + $0x4] sm:$0xf]
      %v456 = vld [vmem:[#allocation9 + $0x8] sm:$0xf]
      %v457 = vld [vmem:[#allocation9 + $0xc] sm:$0xf]
      %v458 = vld [vmem:[#allocation9 + $0x10] sm:$0xf]
      %v459 = vld [vmem:[#allocation9 + $0x14] sm:$0xf]
      %v460 = vld [vmem:[#allocation9 + $0x18] sm:$0xf]
      %v461 = vld [vmem:[#allocation9 + $0x1c] sm:$0xf]
      %v462 = vld [vmem:[#allocation9 + $0x20] sm:$0xf]
      %v463 = vld [vmem:[#allocation9 + $0x24] sm:$0xf]
      %v464 = vld [vmem:[#allocation9 + $0x28] sm:$0xf]
      %v465 = vld [vmem:[#allocation9 + $0x2c] sm:$0xf]
      %v466 = vld [vmem:[#allocation9 + $0x30] sm:$0xf]
      %v467 = vld [vmem:[#allocation9 + $0x34] sm:$0xf]
      %v468 = vld [vmem:[#allocation9 + $0x38] sm:$0xf]
      %v469 = vld [vmem:[#allocation9 + $0x3c] sm:$0xf]
      %v470 = vld [vmem:[%s4] sm:$0x1]
      %v472 = vlaneseq
      %v473 = vshrl.u32 %v472, 7
      %v474 = vsub.s32 0, %v473
      %v475 = vrot.slane %v470, %v474
      %v493 = vunpack.c.l.b16 %v454
      %v494 = vunpack.c.l.b16 %v455
      %v495 = vunpack.c.l.b16 %v456
      %v496 = vunpack.c.l.b16 %v457
      %v497 = vunpack.c.l.b16 %v458
      %v498 = vunpack.c.l.b16 %v459
      %v499 = vunpack.c.l.b16 %v460
      %v500 = vunpack.c.l.b16 %v461
      %v501 = vunpack.c.l.b16 %v462
      %v502 = vunpack.c.l.b16 %v463
      %v503 = vunpack.c.l.b16 %v464
      %v504 = vunpack.c.l.b16 %v465
      %v505 = vunpack.c.l.b16 %v466
      %v506 = vunpack.c.l.b16 %v467
      %v507 = vunpack.c.l.b16 %v468
      %v508 = vunpack.c.l.b16 %v469
      %v509 = vpack.c.b16 %v494, %v493
      %v510 = vpack.c.b16 %v496, %v495
      %v511 = vpack.c.b16 %v498, %v497
      %v512 = vpack.c.b16 %v500, %v499
      %v513 = vpack.c.b16 %v502, %v501
      %v514 = vpack.c.b16 %v504, %v503
      %v515 = vpack.c.b16 %v506, %v505
      %v516 = vpack.c.b16 %v508, %v507
      %525 = vmatprep.subr.bf16.mxu0 0
      %526 = vmatpush1.bf16.msra.mxu0 %v509
      %527 = vmatprep.subr.bf16.mxu0 0
      %528 = vmatpush1.bf16.msra.mxu0 %v510
      %529 = vmatprep.subr.bf16.mxu0 0
      %530 = vmatpush1.bf16.msra.mxu0 %v511
      %531 = vmatprep.subr.bf16.mxu0 0
      %532 = vmatpush1.bf16.msra.mxu0 %v512
      %533 = vmatprep.subr.bf16.mxu0 0
      %534 = vmatpush1.bf16.msra.mxu0 %v513
      %535 = vmatprep.subr.bf16.mxu0 0
      %536 = vmatpush1.bf16.msra.mxu0 %v514
      %537 = vmatprep.subr.bf16.mxu0 0
      %538 = vmatpush1.bf16.msra.mxu0 %v515
      %539 = vmatprep.subr.bf16.mxu0 0
      %540 = vmatpush1.bf16.msra.mxu0 %v516
      %541 = vmatprep.subr.bf16.mxu0 0
      %542 = vmatpush1.bf16.msra.mxu0 0
      %543 = vmatprep.subr.bf16.mxu0 0
      %544 = vmatpush1.bf16.msra.mxu0 0
      %545 = vmatprep.subr.bf16.mxu0 0
      %546 = vmatpush1.bf16.msra.mxu0 0
      %547 = vmatprep.subr.bf16.mxu0 0
      %548 = vmatpush1.bf16.msra.mxu0 0
      %549 = vmatprep.subr.bf16.mxu0 0
      %550 = vmatpush1.bf16.msra.mxu0 0
      %551 = vmatprep.subr.bf16.mxu0 0
      %552 = vmatpush1.bf16.msra.mxu0 0
      %553 = vmatprep.subr.bf16.mxu0 0
      %554 = vmatpush1.bf16.msra.mxu0 0
      %555 = vmatprep.subr.bf16.mxu0 0
      %556 = vmatpush1.bf16.msra.mxu0 0
      %557 = vmatprep.mubr.bf16.mxu0 0
      %558 = vmatmul.mubr.bf16.gmra.mrb[0].mxu0 %v453
      %v559 = vpop.f32.mrb[0].mxu0
      %v560 = vadd.f32 %v475, %v559
      %v561 = vpop.f32.mrb[0].mxu0
      %v562 = vpop.f32.mrb[0].mxu0
      %v563 = vpop.f32.mrb[0].mxu0
      %564 = vdwg.mxu0
      %v565 = vld [vmem:[#allocation2] sm:$0xf]
      %v566 = vpack.c.bf16 %v565, %v565
      %v567 = vld [vmem:[#allocation3] sm:$0xf]
      %v568 = vpack.c.bf16 %v567, %v567
      %v569 = vpack.c.bf16 %v560, %v560
      %v570 = vld [vmem:[#allocation10] sm:$0xf]
      %v571 = vld [vmem:[#allocation10 + $0x4] sm:$0xf]
      %v572 = vld [vmem:[#allocation10 + $0x8] sm:$0xf]
      %v573 = vld [vmem:[#allocation10 + $0xc] sm:$0xf]
      %v574 = vld [vmem:[#allocation10 + $0x10] sm:$0xf]
      %v575 = vld [vmem:[#allocation10 + $0x14] sm:$0xf]
      %v576 = vld [vmem:[#allocation10 + $0x18] sm:$0xf]
      %v577 = vld [vmem:[#allocation10 + $0x1c] sm:$0xf]
      %v578 = vld [vmem:[#allocation10 + $0x20] sm:$0xf]
      %v579 = vld [vmem:[#allocation10 + $0x24] sm:$0xf]
      %v580 = vld [vmem:[#allocation10 + $0x28] sm:$0xf]
      %v581 = vld [vmem:[#allocation10 + $0x2c] sm:$0xf]
      %v582 = vld [vmem:[#allocation10 + $0x30] sm:$0xf]
      %v583 = vld [vmem:[#allocation10 + $0x34] sm:$0xf]
      %v584 = vld [vmem:[#allocation10 + $0x38] sm:$0xf]
      %v585 = vld [vmem:[#allocation10 + $0x3c] sm:$0xf]
      %v586 = vld [vmem:[#allocation10 + $0x40] sm:$0xf]
      %v587 = vld [vmem:[#allocation10 + $0x44] sm:$0xf]
      %v588 = vld [vmem:[#allocation10 + $0x48] sm:$0xf]
      %v589 = vld [vmem:[#allocation10 + $0x4c] sm:$0xf]
      %v590 = vld [vmem:[#allocation10 + $0x50] sm:$0xf]
      %v591 = vld [vmem:[#allocation10 + $0x54] sm:$0xf]
      %v592 = vld [vmem:[#allocation10 + $0x58] sm:$0xf]
      %v593 = vld [vmem:[#allocation10 + $0x5c] sm:$0xf]
      %v594 = vld [vmem:[#allocation10 + $0x60] sm:$0xf]
      %v595 = vld [vmem:[#allocation10 + $0x64] sm:$0xf]
      %v596 = vld [vmem:[#allocation10 + $0x68] sm:$0xf]
      %v597 = vld [vmem:[#allocation10 + $0x6c] sm:$0xf]
      %v598 = vld [vmem:[#allocation10 + $0x70] sm:$0xf]
      %v599 = vld [vmem:[#allocation10 + $0x74] sm:$0xf]
      %v600 = vld [vmem:[#allocation10 + $0x78] sm:$0xf]
      %v601 = vld [vmem:[#allocation10 + $0x7c] sm:$0xf]
      %v602 = vld [vmem:[#allocation10 + $0x80] sm:$0xf]
      %v603 = vld [vmem:[#allocation10 + $0x84] sm:$0xf]
      %v604 = vld [vmem:[#allocation10 + $0x88] sm:$0xf]
      %v605 = vld [vmem:[#allocation10 + $0x8c] sm:$0xf]
      %v606 = vld [vmem:[#allocation10 + $0x90] sm:$0xf]
      %v607 = vld [vmem:[#allocation10 + $0x94] sm:$0xf]
      %v608 = vld [vmem:[#allocation10 + $0x98] sm:$0xf]
      %v609 = vld [vmem:[#allocation10 + $0x9c] sm:$0xf]
      %v610 = vld [vmem:[#allocation10 + $0xa0] sm:$0xf]
      %v611 = vld [vmem:[#allocation10 + $0xa4] sm:$0xf]
      %v612 = vld [vmem:[#allocation10 + $0xa8] sm:$0xf]
      %v613 = vld [vmem:[#allocation10 + $0xac] sm:$0xf]
      %v614 = vld [vmem:[#allocation10 + $0xb0] sm:$0xf]
      %v615 = vld [vmem:[#allocation10 + $0xb4] sm:$0xf]
      %v616 = vld [vmem:[#allocation10 + $0xb8] sm:$0xf]
      %v617 = vld [vmem:[#allocation10 + $0xbc] sm:$0xf]
      %v618 = vld [vmem:[%s6] sm:$0x1]
      %v620 = vlaneseq
      %v621 = vshrl.u32 %v620, 7
      %v622 = vsub.s32 0, %v621
      %v623 = vrot.slane %v618, %v622
      %v673 = vunpack.c.l.b16 %v570
      %v674 = vunpack.c.l.b16 %v571
      %v675 = vunpack.c.l.b16 %v572
      %v676 = vunpack.c.l.b16 %v573
      %v677 = vunpack.c.l.b16 %v574
      %v678 = vunpack.c.l.b16 %v575
      %v679 = vunpack.c.l.b16 %v576
      %v680 = vunpack.c.l.b16 %v577
      %v681 = vunpack.c.l.b16 %v578
      %v682 = vunpack.c.l.b16 %v579
      %v683 = vunpack.c.l.b16 %v580
      %v684 = vunpack.c.l.b16 %v581
      %v685 = vunpack.c.l.b16 %v582
      %v686 = vunpack.c.l.b16 %v583
      %v687 = vunpack.c.l.b16 %v584
      %v688 = vunpack.c.l.b16 %v585
      %v689 = vunpack.c.l.b16 %v586
      %v690 = vunpack.c.l.b16 %v587
      %v691 = vunpack.c.l.b16 %v588
      %v692 = vunpack.c.l.b16 %v589
      %v693 = vunpack.c.l.b16 %v590
      %v694 = vunpack.c.l.b16 %v591
      %v695 = vunpack.c.l.b16 %v592
      %v696 = vunpack.c.l.b16 %v593
      %v697 = vunpack.c.l.b16 %v594
      %v698 = vunpack.c.l.b16 %v595
      %v699 = vunpack.c.l.b16 %v596
      %v700 = vunpack.c.l.b16 %v597
      %v701 = vunpack.c.l.b16 %v598
      %v702 = vunpack.c.l.b16 %v599
      %v703 = vunpack.c.l.b16 %v600
      %v704 = vunpack.c.l.b16 %v601
      %v705 = vunpack.c.l.b16 %v602
      %v706 = vunpack.c.l.b16 %v603
      %v707 = vunpack.c.l.b16 %v604
      %v708 = vunpack.c.l.b16 %v605
      %v709 = vunpack.c.l.b16 %v606
      %v710 = vunpack.c.l.b16 %v607
      %v711 = vunpack.c.l.b16 %v608
      %v712 = vunpack.c.l.b16 %v609
      %v713 = vunpack.c.l.b16 %v610
      %v714 = vunpack.c.l.b16 %v611
      %v715 = vunpack.c.l.b16 %v612
      %v716 = vunpack.c.l.b16 %v613
      %v717 = vunpack.c.l.b16 %v614
      %v718 = vunpack.c.l.b16 %v615
      %v719 = vunpack.c.l.b16 %v616
      %v720 = vunpack.c.l.b16 %v617
      %v721 = vpack.c.b16 %v674, %v673
      %v722 = vpack.c.b16 %v676, %v675
      %v723 = vpack.c.b16 %v678, %v677
      %v724 = vpack.c.b16 %v680, %v679
      %v725 = vpack.c.b16 %v682, %v681
      %v726 = vpack.c.b16 %v684, %v683
      %v727 = vpack.c.b16 %v686, %v685
      %v728 = vpack.c.b16 %v688, %v687
      %v729 = vpack.c.b16 %v690, %v689
      %v730 = vpack.c.b16 %v692, %v691
      %v731 = vpack.c.b16 %v694, %v693
      %v732 = vpack.c.b16 %v696, %v695
      %v733 = vpack.c.b16 %v698, %v697
      %v734 = vpack.c.b16 %v700, %v699
      %v735 = vpack.c.b16 %v702, %v701
      %v736 = vpack.c.b16 %v704, %v703
      %v737 = vpack.c.b16 %v706, %v705
      %v738 = vpack.c.b16 %v708, %v707
      %v739 = vpack.c.b16 %v710, %v709
      %v740 = vpack.c.b16 %v712, %v711
      %v741 = vpack.c.b16 %v714, %v713
      %v742 = vpack.c.b16 %v716, %v715
      %v743 = vpack.c.b16 %v718, %v717
      %v744 = vpack.c.b16 %v720, %v719
      %769 = vmatprep.subr.bf16.mxu0 0
      %770 = vmatpush1.bf16.msra.mxu0 %v721
      %771 = vmatprep.subr.bf16.mxu0 0
      %772 = vmatpush1.bf16.msra.mxu0 %v722
      %773 = vmatprep.subr.bf16.mxu0 0
      %774 = vmatpush1.bf16.msra.mxu0 %v723
      %775 = vmatprep.subr.bf16.mxu0 0
      %776 = vmatpush1.bf16.msra.mxu0 %v724
      %777 = vmatprep.subr.bf16.mxu0 0
      %778 = vmatpush1.bf16.msra.mxu0 %v725
      %779 = vmatprep.subr.bf16.mxu0 0
      %780 = vmatpush1.bf16.msra.mxu0 %v726
      %781 = vmatprep.subr.bf16.mxu0 0
      %782 = vmatpush1.bf16.msra.mxu0 %v727
      %783 = vmatprep.subr.bf16.mxu0 0
      %784 = vmatpush1.bf16.msra.mxu0 %v728
      %785 = vmatprep.subr.bf16.mxu0 0
      %786 = vmatpush1.bf16.msra.mxu0 %v729
      %787 = vmatprep.subr.bf16.mxu0 0
      %788 = vmatpush1.bf16.msra.mxu0 %v730
      %789 = vmatprep.subr.bf16.mxu0 0
      %790 = vmatpush1.bf16.msra.mxu0 %v731
      %791 = vmatprep.subr.bf16.mxu0 0
      %792 = vmatpush1.bf16.msra.mxu0 %v732
      %793 = vmatprep.subr.bf16.mxu0 0
      %794 = vmatpush1.bf16.msra.mxu0 %v733
      %795 = vmatprep.subr.bf16.mxu0 0
      %796 = vmatpush1.bf16.msra.mxu0 %v734
      %797 = vmatprep.subr.bf16.mxu0 0
      %798 = vmatpush1.bf16.msra.mxu0 %v735
      %799 = vmatprep.subr.bf16.mxu0 0
      %800 = vmatpush1.bf16.msra.mxu0 %v736
      %801 = vmatprep.mubr.bf16.mxu0 %v568
      %802 = vmatmul.mubr.bf16.gmra.mrb[0].mxu0 %v566
      %v803 = vpop.f32.mrb[0].mxu0
      %v804 = vadd.f32 %v623, %v803
      %v805 = vpop.f32.mrb[0].mxu0
      %v806 = vpop.f32.mrb[0].mxu0
      %v807 = vpop.f32.mrb[0].mxu0
      %808 = vdwg.mxu0
      %809 = vmatprep.subr.bf16.mxu0 0
      %810 = vmatpush1.bf16.msra.mxu0 %v737
      %811 = vmatprep.subr.bf16.mxu0 0
      %812 = vmatpush1.bf16.msra.mxu0 %v738
      %813 = vmatprep.subr.bf16.mxu0 0
      %814 = vmatpush1.bf16.msra.mxu0 %v739
      %815 = vmatprep.subr.bf16.mxu0 0
      %816 = vmatpush1.bf16.msra.mxu0 %v740
      %817 = vmatprep.subr.bf16.mxu0 0
      %818 = vmatpush1.bf16.msra.mxu0 %v741
      %819 = vmatprep.subr.bf16.mxu0 0
      %820 = vmatpush1.bf16.msra.mxu0 %v742
      %821 = vmatprep.subr.bf16.mxu0 0
      %822 = vmatpush1.bf16.msra.mxu0 %v743
      %823 = vmatprep.subr.bf16.mxu0 0
      %824 = vmatpush1.bf16.msra.mxu0 %v744
      %825 = vmatprep.subr.bf16.mxu0 0
      %826 = vmatpush1.bf16.msra.mxu0 0
      %827 = vmatprep.subr.bf16.mxu0 0
      %828 = vmatpush1.bf16.msra.mxu0 0
      %829 = vmatprep.subr.bf16.mxu0 0
      %830 = vmatpush1.bf16.msra.mxu0 0
      %831 = vmatprep.subr.bf16.mxu0 0
      %832 = vmatpush1.bf16.msra.mxu0 0
      %833 = vmatprep.subr.bf16.mxu0 0
      %834 = vmatpush1.bf16.msra.mxu0 0
      %835 = vmatprep.subr.bf16.mxu0 0
      %836 = vmatpush1.bf16.msra.mxu0 0
      %837 = vmatprep.subr.bf16.mxu0 0
      %838 = vmatpush1.bf16.msra.mxu0 0
      %839 = vmatprep.subr.bf16.mxu0 0
      %840 = vmatpush1.bf16.msra.mxu0 0
      %841 = vmatprep.mubr.bf16.mxu0 0
      %842 = vmatmul.mubr.bf16.gmra.mrb[0].mxu0 %v569
      %v843 = vpop.f32.mrb[0].mxu0
      %v844 = vadd.f32 %v804, %v843
      %v845 = vpop.f32.mrb[0].mxu0
      %v846 = vpop.f32.mrb[0].mxu0
      %v847 = vpop.f32.mrb[0].mxu0
      %848 = vdwg.mxu0
      %v849 = vmax.f32 %v844, 0.0
      %v850 = vpack.c.bf16 %v849, %v849
      %v851 = vld [vmem:[#allocation12] sm:$0xf]
      %v852 = vld [vmem:[#allocation12 + $0x4] sm:$0xf]
      %v853 = vld [vmem:[#allocation12 + $0x8] sm:$0xf]
      %v854 = vld [vmem:[#allocation12 + $0xc] sm:$0xf]
      %v855 = vld [vmem:[#allocation12 + $0x10] sm:$0xf]
      %v856 = vld [vmem:[#allocation12 + $0x14] sm:$0xf]
      %v857 = vld [vmem:[#allocation12 + $0x18] sm:$0xf]
      %v858 = vld [vmem:[#allocation12 + $0x1c] sm:$0xf]
      %v859 = vld [vmem:[#allocation12 + $0x20] sm:$0xf]
      %v860 = vld [vmem:[#allocation12 + $0x24] sm:$0xf]
      %v861 = vld [vmem:[#allocation12 + $0x28] sm:$0xf]
      %v862 = vld [vmem:[#allocation12 + $0x2c] sm:$0xf]
      %v863 = vld [vmem:[#allocation12 + $0x30] sm:$0xf]
      %v864 = vld [vmem:[#allocation12 + $0x34] sm:$0xf]
      %v865 = vld [vmem:[#allocation12 + $0x38] sm:$0xf]
      %v866 = vld [vmem:[#allocation12 + $0x3c] sm:$0xf]
      %v867 = vld [vmem:[%s8] sm:$0x1]
      %v869 = vlaneseq
      %v870 = vshrl.u32 %v869, 7
      %v871 = vsub.s32 0, %v870
      %v872 = vrot.slane %v867, %v871
      %v890 = vunpack.c.l.b16 %v851
      %v891 = vunpack.c.l.b16 %v852
      %v892 = vunpack.c.l.b16 %v853
      %v893 = vunpack.c.l.b16 %v854
      %v894 = vunpack.c.l.b16 %v855
      %v895 = vunpack.c.l.b16 %v856
      %v896 = vunpack.c.l.b16 %v857
      %v897 = vunpack.c.l.b16 %v858
      %v898 = vunpack.c.l.b16 %v859
      %v899 = vunpack.c.l.b16 %v860
      %v900 = vunpack.c.l.b16 %v861
      %v901 = vunpack.c.l.b16 %v862
      %v902 = vunpack.c.l.b16 %v863
      %v903 = vunpack.c.l.b16 %v864
      %v904 = vunpack.c.l.b16 %v865
      %v905 = vunpack.c.l.b16 %v866
      %v906 = vpack.c.b16 %v891, %v890
      %v907 = vpack.c.b16 %v893, %v892
      %v908 = vpack.c.b16 %v895, %v894
      %v909 = vpack.c.b16 %v897, %v896
      %v910 = vpack.c.b16 %v899, %v898
      %v911 = vpack.c.b16 %v901, %v900
      %v912 = vpack.c.b16 %v903, %v902
      %v913 = vpack.c.b16 %v905, %v904
      %922 = vmatprep.subr.bf16.mxu0 0
      %923 = vmatpush1.bf16.msra.mxu0 %v906
      %924 = vmatprep.subr.bf16.mxu0 0
      %925 = vmatpush1.bf16.msra.mxu0 %v907
      %926 = vmatprep.subr.bf16.mxu0 0
      %927 = vmatpush1.bf16.msra.mxu0 %v908
      %928 = vmatprep.subr.bf16.mxu0 0
      %929 = vmatpush1.bf16.msra.mxu0 %v909
      %930 = vmatprep.subr.bf16.mxu0 0
      %931 = vmatpush1.bf16.msra.mxu0 %v910
      %932 = vmatprep.subr.bf16.mxu0 0
      %933 = vmatpush1.bf16.msra.mxu0 %v911
      %934 = vmatprep.subr.bf16.mxu0 0
      %935 = vmatpush1.bf16.msra.mxu0 %v912
      %936 = vmatprep.subr.bf16.mxu0 0
      %937 = vmatpush1.bf16.msra.mxu0 %v913
      %938 = vmatprep.subr.bf16.mxu0 0
      %939 = vmatpush1.bf16.msra.mxu0 0
      %940 = vmatprep.subr.bf16.mxu0 0
      %941 = vmatpush1.bf16.msra.mxu0 0
      %942 = vmatprep.subr.bf16.mxu0 0
      %943 = vmatpush1.bf16.msra.mxu0 0
      %944 = vmatprep.subr.bf16.mxu0 0
      %945 = vmatpush1.bf16.msra.mxu0 0
      %946 = vmatprep.subr.bf16.mxu0 0
      %947 = vmatpush1.bf16.msra.mxu0 0
      %948 = vmatprep.subr.bf16.mxu0 0
      %949 = vmatpush1.bf16.msra.mxu0 0
      %950 = vmatprep.subr.bf16.mxu0 0
      %951 = vmatpush1.bf16.msra.mxu0 0
      %952 = vmatprep.subr.bf16.mxu0 0
      %953 = vmatpush1.bf16.msra.mxu0 0
      %954 = vmatprep.mubr.bf16.mxu0 0
      %955 = vmatmul.mubr.bf16.gmra.mrb[0].mxu0 %v850
      %v956 = vpop.f32.mrb[0].mxu0
      %v957 = vadd.f32 %v872, %v956
      %v958 = vpop.f32.mrb[0].mxu0
      %v959 = vpop.f32.mrb[0].mxu0
      %v960 = vpop.f32.mrb[0].mxu0
      %961 = vdwg.mxu0
      %v962 = vmax.f32 %v957, 0.0
      %v963 = vpack.c.bf16 %v962, %v962
      %v964 = vld [vmem:[#allocation13] sm:$0xf]
      %v965 = vld [vmem:[#allocation13 + $0x4] sm:$0xf]
      %v966 = vld [vmem:[#allocation13 + $0x8] sm:$0xf]
      %v967 = vld [vmem:[#allocation13 + $0xc] sm:$0xf]
      %v968 = vld [vmem:[#allocation13 + $0x10] sm:$0xf]
      %v969 = vld [vmem:[#allocation13 + $0x14] sm:$0xf]
      %v970 = vld [vmem:[#allocation13 + $0x18] sm:$0xf]
      %v971 = vld [vmem:[#allocation13 + $0x1c] sm:$0xf]
      %v972 = vld [vmem:[#allocation13 + $0x20] sm:$0xf]
      %v973 = vld [vmem:[#allocation13 + $0x24] sm:$0xf]
      %v974 = vld [vmem:[#allocation13 + $0x28] sm:$0xf]
      %v975 = vld [vmem:[#allocation13 + $0x2c] sm:$0xf]
      %v976 = vld [vmem:[#allocation13 + $0x30] sm:$0xf]
      %v977 = vld [vmem:[#allocation13 + $0x34] sm:$0xf]
      %v978 = vld [vmem:[#allocation13 + $0x38] sm:$0xf]
      %v979 = vld [vmem:[#allocation13 + $0x3c] sm:$0xf]
      %v980 = vld [vmem:[%s10] sm:$0x1]
      %v982 = vlaneseq
      %v983 = vshrl.u32 %v982, 7
      %v984 = vsub.s32 0, %v983
      %v985 = vrot.slane %v980, %v984
      %v1003 = vunpack.c.l.b16 %v964
      %v1004 = vunpack.c.l.b16 %v965
      %v1005 = vunpack.c.l.b16 %v966
      %v1006 = vunpack.c.l.b16 %v967
      %v1007 = vunpack.c.l.b16 %v968
      %v1008 = vunpack.c.l.b16 %v969
      %v1009 = vunpack.c.l.b16 %v970
      %v1010 = vunpack.c.l.b16 %v971
      %v1011 = vunpack.c.l.b16 %v972
      %v1012 = vunpack.c.l.b16 %v973
      %v1013 = vunpack.c.l.b16 %v974
      %v1014 = vunpack.c.l.b16 %v975
      %v1015 = vunpack.c.l.b16 %v976
      %v1016 = vunpack.c.l.b16 %v977
      %v1017 = vunpack.c.l.b16 %v978
      %v1018 = vunpack.c.l.b16 %v979
      %v1019 = vpack.c.b16 %v1004, %v1003
      %v1020 = vpack.c.b16 %v1006, %v1005
      %v1021 = vpack.c.b16 %v1008, %v1007
      %v1022 = vpack.c.b16 %v1010, %v1009
      %v1023 = vpack.c.b16 %v1012, %v1011
      %v1024 = vpack.c.b16 %v1014, %v1013
      %v1025 = vpack.c.b16 %v1016, %v1015
      %v1026 = vpack.c.b16 %v1018, %v1017
      %1035 = vmatprep.subr.bf16.mxu0 0
      %1036 = vmatpush1.bf16.msra.mxu0 %v1019
      %1037 = vmatprep.subr.bf16.mxu0 0
      %1038 = vmatpush1.bf16.msra.mxu0 %v1020
      %1039 = vmatprep.subr.bf16.mxu0 0
      %1040 = vmatpush1.bf16.msra.mxu0 %v1021
      %1041 = vmatprep.subr.bf16.mxu0 0
      %1042 = vmatpush1.bf16.msra.mxu0 %v1022
      %1043 = vmatprep.subr.bf16.mxu0 0
      %1044 = vmatpush1.bf16.msra.mxu0 %v1023
      %1045 = vmatprep.subr.bf16.mxu0 0
      %1046 = vmatpush1.bf16.msra.mxu0 %v1024
      %1047 = vmatprep.subr.bf16.mxu0 0
      %1048 = vmatpush1.bf16.msra.mxu0 %v1025
      %1049 = vmatprep.subr.bf16.mxu0 0
      %1050 = vmatpush1.bf16.msra.mxu0 %v1026
      %1051 = vmatprep.subr.bf16.mxu0 0
      %1052 = vmatpush1.bf16.msra.mxu0 0
      %1053 = vmatprep.subr.bf16.mxu0 0
      %1054 = vmatpush1.bf16.msra.mxu0 0
      %1055 = vmatprep.subr.bf16.mxu0 0
      %1056 = vmatpush1.bf16.msra.mxu0 0
      %1057 = vmatprep.subr.bf16.mxu0 0
      %1058 = vmatpush1.bf16.msra.mxu0 0
      %1059 = vmatprep.subr.bf16.mxu0 0
      %1060 = vmatpush1.bf16.msra.mxu0 0
      %1061 = vmatprep.subr.bf16.mxu0 0
      %1062 = vmatpush1.bf16.msra.mxu0 0
      %1063 = vmatprep.subr.bf16.mxu0 0
      %1064 = vmatpush1.bf16.msra.mxu0 0
      %1065 = vmatprep.subr.bf16.mxu0 0
      %1066 = vmatpush1.bf16.msra.mxu0 0
      %1067 = vmatprep.mubr.bf16.mxu0 0
      %1068 = vmatmul.mubr.bf16.gmra.mrb[0].mxu0 %v963
      %v1069 = vpop.f32.mrb[0].mxu0
      %v1070 = vadd.f32 %v985, %v1069
      %v1071 = vpop.f32.mrb[0].mxu0
      %v1072 = vpop.f32.mrb[0].mxu0
      %v1073 = vpop.f32.mrb[0].mxu0
      %1074 = vdwg.mxu0
      %1075 = vst [vmem:[#allocation15] sm:$0xf] %v1070
    $region77: #{tpu_custom_call.1} parent=1 // pred_fallthru
      _
    // Predicated region
    $region78: #{tpu_custom_call.1} parent=1 // pred_check
      _
    $region79: #{tpu_custom_call.1} parent=1 // pred_check_branch
      %1077 = sbr.rel (0) target = $region81
    $region80: #{tpu_custom_call.1} parent=1 // pred_region
      %s1079 = ssub.s32 64, 64
      %1080 = vsyncadd [#allocation6], %s1079
      %s1082 = sshll.u32 [#allocation15], 4
      %s1083 = int_to_ptr.vmem [resolvable:$true] %s1082
      %1085 = dma.vmem_to_hbm [thread:$0]  %s1083, 64, %s11, [#allocation6]
    $region81: #{tpu_custom_call.1} parent=1 // pred_fallthru
      _
    // Predicated region
    $region82: #{tpu_custom_call.1} parent=1 // pred_check
      _
    $region83: #{tpu_custom_call.1} parent=1 // pred_check_branch
      %1087 = sbr.rel (0) target = $region85
    $region84: #{tpu_custom_call.1} parent=1 // pred_region
      %1088 = dma.done [#allocation6], 64
    $region85: #{tpu_custom_call.1} parent=1 // pred_fallthru
      _
    %1089 = vsyncpa [#allocation5], 1
    %1090 = vsyncpa [#allocation8], 1
    %1091 = vsyncpa [#allocation11], 1
    %1092 = vsyncpa [#allocation14], 1
    %1093 = vsyncpa [#allocation6], 1

</llo_original>
